<compile_context>
chip_gen: v5e
topology: v5e:2x2
jax: 0.10.0
libtpu: 0.0.40
codegen_flags: <defaults>
</compile_context>

<pallas_src>
import jax
import jax.numpy as jnp
from jax.experimental import pallas as pl
from jax.experimental.pallas import tpu as pltpu


def _value_mlp_kernel(x_ref, w1_ref, w23_ref, b_ref, w4_ref, b4_ref, out_ref):
    # x_ref  : (F, tm)   packed [belief|state|condition]^T, compute dtype
    # w1_ref : (H, F)    fc1 weight^T, compute dtype
    # w23_ref: (2, H, H) fc2/fc3 weights^T, compute dtype
    # b_ref  : (H, 3)    fc1/fc2/fc3 biases as columns, float32
    # w4_ref : (1, H)    fc4 weight row, compute dtype
    # b4_ref : (1, 1)    fc4 bias, float32
    # out_ref: (1, tm)   value row, float32 (lane-dense)
    cd = w1_ref.dtype
    b = b_ref[...]                                                  # (H, 3) f32

    # fc1: single fused dot over the packed feature axis (batch on lanes).
    h = jnp.dot(w1_ref[...], x_ref[...], preferred_element_type=jnp.float32)
    h = jnp.maximum(h + b[:, 0:1], 0.0)                             # (H, tm) f32

    # fc2 + relu
    h = jnp.dot(w23_ref[0], h.astype(cd), preferred_element_type=jnp.float32)
    h = jnp.maximum(h + b[:, 1:2], 0.0)

    # fc3 + relu
    h = jnp.dot(w23_ref[1], h.astype(cd), preferred_element_type=jnp.float32)
    h = jnp.maximum(h + b[:, 2:3], 0.0)

    # fc4: (1, H) @ (H, tm) -> lane-dense (1, tm); all output lanes used.
    v = jnp.dot(w4_ref[...], h.astype(cd), preferred_element_type=jnp.float32)
    out_ref[...] = (v + b4_ref[...]).astype(out_ref.dtype)


def _round_up(x, m):
    return ((x + m - 1) // m) * m


def conditional_value_model(belief, state, condition, params, *,
                            tile_m=2048, compute_dtype=jnp.bfloat16):
    """Fused value-MLP Pallas kernel. Returns shape (B,) float32.

    tile_m:        batch rows (lanes) per grid step; rounded to a multiple of 128.
    compute_dtype: dtype of the MXU operands (default bf16). Bias-add, ReLU and all
                   accumulation stay float32; with bf16 the result differs from an
                   f32 reference at ~1e-3 relative (expected quantization).
    """
    B = belief.shape[0]
    w1, b1, w2, b2, w3, b3, w4, b4 = params
    F, H = w1.shape
    assert belief.shape[1] + state.shape[1] + condition.shape[1] == F

    # Pack the three activation streams once in the wrapper (single fused fc1 dot),
    # feature-major so the batch sits on the lane axis inside the kernel.
    x = jnp.concatenate([belief, state, condition], axis=1)          # (B, F)

    # Parameter layout prep (in real use, do this once and cache).
    w1t = w1.T                                                       # (H, F)
    w23t = jnp.stack([w2.T, w3.T])                                   # (2, H, H)
    bcols = jnp.stack([b1.reshape(H), b2.reshape(H), b3.reshape(H)], axis=1)  # (H, 3)
    w4row = w4.reshape(1, H)
    b4sc = b4.reshape(1, 1)

    if compute_dtype is not None:
        x = x.astype(compute_dtype)
        w1t = w1t.astype(compute_dtype)
        w23t = w23t.astype(compute_dtype)
        w4row = w4row.astype(compute_dtype)
        # biases stay f32: bias-add / ReLU run on the f32 VPU path.

    x_t = x.T                                                        # (F, B)

    # --- batch tiling --------------------------------------------------------
    # tm must be a multiple of 128 (lane-dense output blocks) or equal to B.
    if B <= 128:
        tm = B                                   # tiny batch: one full-array block
    else:
        tile_m = max(128, _round_up(tile_m, 128))
        # aim for >= 2 grid steps so both v7x TensorCores get work
        tm = min(tile_m, _round_up(pl.cdiv(B, 2), 128))
    grid = (pl.cdiv(B, tm),)                     # final block may be ragged (masked)

    const_spec = lambda a: pl.BlockSpec(a.shape, lambda i: (0,) * a.ndim)

    out = pl.pallas_call(
        _value_mlp_kernel,
        out_shape=jax.ShapeDtypeStruct((1, B), jnp.float32),
        grid=grid,
        in_specs=[
            pl.BlockSpec((F, tm), lambda i: (0, i)),   # activations, pipelined per step
            const_spec(w1t), const_spec(w23t), const_spec(bcols),
            const_spec(w4row), const_spec(b4sc),
        ],
        out_specs=pl.BlockSpec((1, tm), lambda i: (0, i)),   # lane-dense value row
        compiler_params=pltpu.CompilerParams(
            dimension_semantics=("parallel",),    # megacore sharding on v7x
            vmem_limit_bytes=32 << 20,            # safe on every gen incl. v7x 64 MiB
        ),
    )(x_t, w1t, w23t, bcols, w4row, b4sc)

    return out[0]          # torch's .squeeze(dim=1) -> shape (B,)


def init_params(key, belief_size, state_size, condition_size, hidden_size):
    """Deterministic synthetic parameters.

    PyTorch nn.Linear stores weight as (out, in); here we store the transpose
    (in, out) so the reference computes x @ W + b.
    """
    in1 = belief_size + state_size + condition_size
    shapes = [
        ((in1, hidden_size), (1, hidden_size)),          # fc1
        ((hidden_size, hidden_size), (1, hidden_size)),  # fc2
        ((hidden_size, hidden_size), (1, hidden_size)),  # fc3
        ((hidden_size, 1), (1, 1)),                      # fc4
    ]
    params = []
    keys = jax.random.split(key, 2 * len(shapes))
    for i, (wshape, bshape) in enumerate(shapes):
        fan_in = wshape[0]
        scale = 1.0 / jnp.sqrt(fan_in)
        w = jax.random.uniform(keys[2 * i], wshape, jnp.float32, -scale, scale)
        b = jax.random.uniform(keys[2 * i + 1], bshape, jnp.float32, -scale, scale)
        params.extend([w, b])
    return tuple(params)


def reference_forward(belief, state, condition, params):
    """Pure-JAX reference matching the PyTorch forward exactly."""
    w1, b1, w2, b2, w3, b3, w4, b4 = params
    x = jnp.concatenate([belief, state, condition], axis=1)
    h = jax.nn.relu(x @ w1 + b1)
    h = jax.nn.relu(h @ w2 + b2)
    h = jax.nn.relu(h @ w3 + b3)
    return (h @ w4 + b4)[:, 0]


if __name__ == "__main__":
    belief_size, state_size, condition_size, hidden_size = 24, 16, 8, 32

    key = jax.random.PRNGKey(0)
    kb, ks, kc, kp = jax.random.split(key, 4)
    params = init_params(kp, belief_size, state_size, condition_size, hidden_size)

    # --- 1) small single-tile batch, exact f32 path ---
    batch = 4
    belief = jax.random.normal(kb, (batch, belief_size), jnp.float32)
    state = jax.random.normal(ks, (batch, state_size), jnp.float32)
    condition = jax.random.normal(kc, (batch, condition_size), jnp.float32)
    ref = reference_forward(belief, state, condition, params)

    v32 = conditional_value_model(belief, state, condition, params, compute_dtype=None)
    v32 = jax.block_until_ready(v32)
    assert v32.shape == (batch,), v32.shape
    assert jnp.allclose(v32, ref, atol=1e-5, rtol=1e-5), (v32, ref)

    # --- 2) default bf16 MXU operands (f32 accumulation): loose tolerance ---
    vbf = jax.block_until_ready(
        conditional_value_model(belief, state, condition, params))
    assert vbf.shape == (batch,), vbf.shape
    assert jnp.allclose(vbf, ref, atol=5e-2, rtol=5e-2), (vbf, ref)

    # --- 3) gridded path: >= 2 steps + ragged (masked) final block, f32 ---
    batch2 = 300
    kb2, ks2, kc2 = jax.random.split(jax.random.PRNGKey(1), 3)
    belief2 = jax.random.normal(kb2, (batch2, belief_size), jnp.float32)
    state2 = jax.random.normal(ks2, (batch2, state_size), jnp.float32)
    condition2 = jax.random.normal(kc2, (batch2, condition_size), jnp.float32)
    ref2 = reference_forward(belief2, state2, condition2, params)

    v2 = conditional_value_model(belief2, state2, condition2, params,
                                 tile_m=128, compute_dtype=None)
    v2 = jax.block_until_ready(v2)
    assert v2.shape == (batch2,), v2.shape
    assert jnp.allclose(v2, ref2, atol=1e-5, rtol=1e-5), (v2, ref2)

    print("KERNEL_OK")
</pallas_src>

<mosaic_0001>
module attributes {stable_mosaic.version = 11 : i64} {
  func.func @_value_mlp_kernel(%arg0: i32, %arg1: memref<48x4xf32, #tpu.memory_space<vmem>>, %arg2: memref<32x48xf32, #tpu.memory_space<vmem>>, %arg3: memref<2x32x32xf32, #tpu.memory_space<vmem>>, %arg4: memref<32x3xf32, #tpu.memory_space<vmem>>, %arg5: memref<1x32xf32, #tpu.memory_space<vmem>>, %arg6: memref<1x1xf32, #tpu.memory_space<vmem>>, %arg7: memref<1x4xf32, #tpu.memory_space<vmem>>) attributes {dimension_semantics = [#tpu.dimension_semantics<parallel>], iteration_bounds = array<i64: 1>, scalar_prefetch = 0 : i64, scratch_operands = 0 : i64, tpu.core_type = #tpu.core_type<tc>, window_params = [{transform_indices = @transform_0, window_bounds = array<i64: 48, 4>}, {pipeline_mode = #tpu.pipeline_mode<synchronous>, transform_indices = @transform_1, window_bounds = array<i64: 32, 48>}, {pipeline_mode = #tpu.pipeline_mode<synchronous>, transform_indices = @transform_2, window_bounds = array<i64: 2, 32, 32>}, {pipeline_mode = #tpu.pipeline_mode<synchronous>, transform_indices = @transform_3, window_bounds = array<i64: 32, 3>}, {pipeline_mode = #tpu.pipeline_mode<synchronous>, transform_indices = @transform_4, window_bounds = array<i64: 1, 32>}, {pipeline_mode = #tpu.pipeline_mode<synchronous>, transform_indices = @transform_5, window_bounds = array<i64: 1, 1>}, {transform_indices = @transform_6, window_bounds = array<i64: 1, 4>}]} {
    %c0 = arith.constant 0 : index
    %c0_0 = arith.constant 0 : index
    %0 = vector.load %arg4[%c0, %c0_0] : memref<32x3xf32, #tpu.memory_space<vmem>>, vector<32x3xf32>
    %c0_1 = arith.constant 0 : index
    %c0_2 = arith.constant 0 : index
    %1 = vector.load %arg2[%c0_1, %c0_2] : memref<32x48xf32, #tpu.memory_space<vmem>>, vector<32x48xf32>
    %c0_3 = arith.constant 0 : index
    %c0_4 = arith.constant 0 : index
    %2 = vector.load %arg1[%c0_3, %c0_4] : memref<48x4xf32, #tpu.memory_space<vmem>>, vector<48x4xf32>
    %cst = arith.constant dense<0.000000e+00> : vector<32x4xf32>
    %3 = tpu.matmul %1, %2, %cst {dimension_numbers = #tpu.dot_dimension_numbers<[1], [0], [0], [1], [0, 0, 1, 1], [], []>} : vector<32x48xf32>, vector<48x4xf32>, vector<32x4xf32> -> vector<32x4xf32>
    %4 = vector.extract_strided_slice %0 {offsets = [0, 0], sizes = [32, 1], strides = [1, 1]} : vector<32x3xf32> to vector<32x1xf32>
    %5 = vector.broadcast %4 : vector<32x1xf32> to vector<32x4xf32>
    %6 = arith.addf %3, %5 : vector<32x4xf32>
    %cst_5 = arith.constant 0.000000e+00 : f32
    %7 = vector.broadcast %cst_5 : f32 to vector<32x4xf32>
    %8 = arith.maximumf %6, %7 : vector<32x4xf32>
    %c0_6 = arith.constant 0 : index
    %c0_7 = arith.constant 0 : index
    %c0_8 = arith.constant 0 : index
    %9 = vector.load %arg3[%c0_6, %c0_7, %c0_8] : memref<2x32x32xf32, #tpu.memory_space<vmem>>, vector<1x32x32xf32>
    %10 = vector.shape_cast %9 : vector<1x32x32xf32> to vector<32x32xf32>
    %cst_9 = arith.constant dense<0.000000e+00> : vector<32x4xf32>
    %11 = tpu.matmul %10, %8, %cst_9 {dimension_numbers = #tpu.dot_dimension_numbers<[1], [0], [0], [1], [0, 0, 1, 1], [], []>} : vector<32x32xf32>, vector<32x4xf32>, vector<32x4xf32> -> vector<32x4xf32>
    %12 = vector.extract_strided_slice %0 {offsets = [0, 1], sizes = [32, 1], strides = [1, 1]} : vector<32x3xf32> to vector<32x1xf32>
    %13 = vector.broadcast %12 : vector<32x1xf32> to vector<32x4xf32>
    %14 = arith.addf %11, %13 : vector<32x4xf32>
    %cst_10 = arith.constant 0.000000e+00 : f32
    %15 = vector.broadcast %cst_10 : f32 to vector<32x4xf32>
    %16 = arith.maximumf %14, %15 : vector<32x4xf32>
    %c1 = arith.constant 1 : index
    %c0_11 = arith.constant 0 : index
    %c0_12 = arith.constant 0 : index
    %17 = vector.load %arg3[%c1, %c0_11, %c0_12] : memref<2x32x32xf32, #tpu.memory_space<vmem>>, vector<1x32x32xf32>
    %18 = vector.shape_cast %17 : vector<1x32x32xf32> to vector<32x32xf32>
    %cst_13 = arith.constant dense<0.000000e+00> : vector<32x4xf32>
    %19 = tpu.matmul %18, %16, %cst_13 {dimension_numbers = #tpu.dot_dimension_numbers<[1], [0], [0], [1], [0, 0, 1, 1], [], []>} : vector<32x32xf32>, vector<32x4xf32>, vector<32x4xf32> -> vector<32x4xf32>
    %20 = vector.extract_strided_slice %0 {offsets = [0, 2], sizes = [32, 1], strides = [1, 1]} : vector<32x3xf32> to vector<32x1xf32>
    %21 = vector.broadcast %20 : vector<32x1xf32> to vector<32x4xf32>
    %22 = arith.addf %19, %21 : vector<32x4xf32>
    %cst_14 = arith.constant 0.000000e+00 : f32
    %23 = vector.broadcast %cst_14 : f32 to vector<32x4xf32>
    %24 = arith.maximumf %22, %23 : vector<32x4xf32>
    %c0_15 = arith.constant 0 : index
    %c0_16 = arith.constant 0 : index
    %25 = vector.load %arg5[%c0_15, %c0_16] : memref<1x32xf32, #tpu.memory_space<vmem>>, vector<1x32xf32>
    %cst_17 = arith.constant dense<0.000000e+00> : vector<1x4xf32>
    %26 = tpu.matmul %25, %24, %cst_17 {dimension_numbers = #tpu.dot_dimension_numbers<[1], [0], [0], [1], [0, 0, 1, 1], [], []>} : vector<1x32xf32>, vector<32x4xf32>, vector<1x4xf32> -> vector<1x4xf32>
    %c0_18 = arith.constant 0 : index
    %c0_19 = arith.constant 0 : index
    %27 = vector.load %arg6[%c0_18, %c0_19] : memref<1x1xf32, #tpu.memory_space<vmem>>, vector<1x1xf32>
    %28 = vector.broadcast %27 : vector<1x1xf32> to vector<1x4xf32>
    %29 = arith.addf %26, %28 : vector<1x4xf32>
    %c0_20 = arith.constant 0 : index
    %c0_21 = arith.constant 0 : index
    %30 = vector.load %arg7[%c0_20, %c0_21] : memref<1x4xf32, #tpu.memory_space<vmem>>, vector<1x4xf32>
    tpu.vector_store %arg7[%c0_20, %c0_21], %29 {strides = array<i32>} : memref<1x4xf32, #tpu.memory_space<vmem>>, vector<1x4xf32>,
    return
  }
  func.func @transform_0(%arg0: i32) -> (i32, i32) {
    %c0_i32 = arith.constant 0 : i32
    %c0_i32_0 = arith.constant 0 : i32
    return %c0_i32, %arg0 : i32, i32
  }
  func.func @transform_1(%arg0: i32) -> (i32, i32) {
    %c0_i32 = arith.constant 0 : i32
    %c0_i32_0 = arith.constant 0 : i32
    %c0_i32_1 = arith.constant 0 : i32
    return %c0_i32, %c0_i32_0 : i32, i32
  }
  func.func @transform_2(%arg0: i32) -> (i32, i32, i32) {
    %c0_i32 = arith.constant 0 : i32
    %c0_i32_0 = arith.constant 0 : i32
    %c0_i32_1 = arith.constant 0 : i32
    %c0_i32_2 = arith.constant 0 : i32
    return %c0_i32, %c0_i32_0, %c0_i32_1 : i32, i32, i32
  }
  func.func @transform_3(%arg0: i32) -> (i32, i32) {
    %c0_i32 = arith.constant 0 : i32
    %c0_i32_0 = arith.constant 0 : i32
    %c0_i32_1 = arith.constant 0 : i32
    return %c0_i32, %c0_i32_0 : i32, i32
  }
  func.func @transform_4(%arg0: i32) -> (i32, i32) {
    %c0_i32 = arith.constant 0 : i32
    %c0_i32_0 = arith.constant 0 : i32
    %c0_i32_1 = arith.constant 0 : i32
    return %c0_i32, %c0_i32_0 : i32, i32
  }
  func.func @transform_5(%arg0: i32) -> (i32, i32) {
    %c0_i32 = arith.constant 0 : i32
    %c0_i32_0 = arith.constant 0 : i32
    %c0_i32_1 = arith.constant 0 : i32
    return %c0_i32, %c0_i32_0 : i32, i32
  }
  func.func @transform_6(%arg0: i32) -> (i32, i32) {
    %c0_i32 = arith.constant 0 : i32
    %c0_i32_0 = arith.constant 0 : i32
    return %c0_i32, %arg0 : i32, i32
  }
}

</mosaic_0001>

<llo_original>
// kernel: tpu_custom_call.1
$region0: #{tpu_custom_call.1}
  #allocation0 [shape = 'u32[]', space=smem, size = 0x4, offset = 0x4, fixed_abs, tag = 'smem constant byte address 0x4 - core index']
  #allocation1 [shape = 'u32[72,128]{1,0:T(1,128)}', space=vmem, size = 0x9000, scoped, tag = 'internal scratch']
  #allocation2 [shape = 'f32[1,1]{1,0:T(1,128)S(1)}', space=vmem, size = 0x200, scoped, tag = 'scoped memory for tpu_custom_call.1']
  %s0 = inlined_call_operand.vmem [shape: f32[48,4], index: 0, kind: input, shape index: {}]
  %s1 = inlined_call_operand.hbm [shape: f32[32,48], index: 1, kind: input, shape index: {}]
  %s2 = inlined_call_operand.vmem [shape: f32[2,32,32], index: 2, kind: input, shape index: {}]
  %s3 = inlined_call_operand.vmem [shape: f32[32,3], index: 3, kind: input, shape index: {}]
  %s4 = inlined_call_operand.vmem [shape: f32[1,32], index: 4, kind: input, shape index: {}]
  %s5 = inlined_call_operand.<no memory space> [shape: f32[1,1], index: 5, kind: input, shape index: {}]
  %s6 = inlined_call_operand.hbm [shape: f32[1,4], index: 6, kind: output, shape index: {}]
  %s7 = sld [smem:[#allocation0]]
  $region38: #{tpu_custom_call.1} parent=0
    _
  %s9 = ssub.s32 1, %s7
  %s10 = scalar_select 0, %s9, %s7
  %v11 = vstv %s5
  %12 = vst [vmem:[#allocation2] sm:$0x1] %v11
  $region1: #{tpu_custom_call.1} parent=0
    #allocation3 [shape = 'u8[16384]{0}', space=vmem, size = 0x4000, scoped, tag = 'input window, operand 1, single buffered']
    #allocation4 [shape = 's32[1]{0}', space=sflag, size = 0x4, scoped, tag = 'scoped memory for tpu_custom_call.1']
    #allocation5 [shape = 's32[1]{0}', space=sflag, size = 0x4, scoped, tag = 'scoped memory for tpu_custom_call.1']
    #allocation6 [shape = 'u8[512]{0}', space=vmem, size = 0x400, scoped, tag = 'output window, operand 0, single buffered']
    %13 = vsyncpa [#allocation4], 0
    %14 = vsyncpa [#allocation5], 0
    // Predicated region
    $region2: #{tpu_custom_call.1} parent=1 // pred_check
      _
    $region3: #{tpu_custom_call.1} parent=1 // pred_check_branch
      %16 = sbr.rel (0) target = $region5
    $region4: #{tpu_custom_call.1} parent=1 // pred_region
      _
    $region5: #{tpu_custom_call.1} parent=1 // pred_fallthru
      _
    // Predicated region
    $region6: #{tpu_custom_call.1} parent=1 // pred_check
      _
    $region7: #{tpu_custom_call.1} parent=1 // pred_check_branch
      %18 = sbr.rel (0) target = $region9
    $region8: #{tpu_custom_call.1} parent=1 // pred_region
      %20 = vsyncadd [#allocation4], 0
      %s21 = sshll.u32 %s1, 4
      %s22 = int_to_ptr.hbm [resolvable:$true] %s21
      %s23 = sshll.u32 [#allocation3], 4
      %s24 = int_to_ptr.vmem [resolvable:$true] %s23
      %29 = dma.hbm_to_vmem [thread:$0]  %s22, 512, %s24, [#allocation4], 128, 128, 8
    $region9: #{tpu_custom_call.1} parent=1 // pred_fallthru
      _
    // Predicated region
    $region10: #{tpu_custom_call.1} parent=1 // pred_check
      _
    $region11: #{tpu_custom_call.1} parent=1 // pred_check_branch
      %31 = sbr.rel (0) target = $region13
    $region12: #{tpu_custom_call.1} parent=1 // pred_region
      _
    $region13: #{tpu_custom_call.1} parent=1 // pred_fallthru
      _
    // Predicated region
    $region14: #{tpu_custom_call.1} parent=1 // pred_check
      _
    $region15: #{tpu_custom_call.1} parent=1 // pred_check_branch
      %33 = sbr.rel (0) target = $region17
    $region16: #{tpu_custom_call.1} parent=1 // pred_region
      _
    $region17: #{tpu_custom_call.1} parent=1 // pred_fallthru
      _
    // Predicated region
    $region18: #{tpu_custom_call.1} parent=1 // pred_check
      _
    $region19: #{tpu_custom_call.1} parent=1 // pred_check_branch
      %35 = sbr.rel (0) target = $region21
    $region20: #{tpu_custom_call.1} parent=1 // pred_region
      _
    $region21: #{tpu_custom_call.1} parent=1 // pred_fallthru
      _
    // Predicated region
    $region22: #{tpu_custom_call.1} parent=1 // pred_check
      _
    $region23: #{tpu_custom_call.1} parent=1 // pred_check_branch
      %37 = sbr.rel (0) target = $region25
    $region24: #{tpu_custom_call.1} parent=1 // pred_region
      _
    $region25: #{tpu_custom_call.1} parent=1 // pred_fallthru
      _
    // Predicated region
    $region26: #{tpu_custom_call.1} parent=1 // pred_check
      _
    $region27: #{tpu_custom_call.1} parent=1 // pred_check_branch
      %39 = sbr.rel (0) target = $region29
    $region28: #{tpu_custom_call.1} parent=1 // pred_region
      %41 = dma.done [#allocation4], 512
    $region29: #{tpu_custom_call.1} parent=1 // pred_fallthru
      _
    %v42 = vld [vmem:[%s3] sm:$0xff]
    %v43 = vld [vmem:[%s3 + $0x8] sm:$0xff]
    %v44 = vld [vmem:[%s3 + $0x10] sm:$0xff]
    %v45 = vld [vmem:[%s3 + $0x18] sm:$0xff]
    %v46 = vld [vmem:[#allocation3] sm:$0xff]
    %v47 = vld [vmem:[#allocation3 + $0x8] sm:$0xff]
    %v48 = vld [vmem:[#allocation3 + $0x10] sm:$0xff]
    %v49 = vld [vmem:[#allocation3 + $0x18] sm:$0xff]
    %v50 = vld [vmem:[%s0] sm:$0xff]
    %v51 = vld [vmem:[%s0 + $0x8] sm:$0xff]
    %v52 = vld [vmem:[%s0 + $0x10] sm:$0xff]
    %v53 = vld [vmem:[%s0 + $0x18] sm:$0xff]
    %v54 = vld [vmem:[%s0 + $0x20] sm:$0xff]
    %v55 = vld [vmem:[%s0 + $0x28] sm:$0xff]
    %57 = vset.pattern.permute.xlu0 0
    %58 = vperm.xlu0 %57, %v42
    %v59 = vpop.permute.xlu0 %58
    %62 = vset.pattern.permute.xlu0 0
    %63 = vperm.xlu0 %62, %v43
    %v64 = vpop.permute.xlu0 %63
    %67 = vset.pattern.permute.xlu0 0
    %68 = vperm.xlu0 %67, %v44
    %v69 = vpop.permute.xlu0 %68
    %72 = vset.pattern.permute.xlu0 0
    %73 = vperm.xlu0 %72, %v45
    %v74 = vpop.permute.xlu0 %73
    %vm76 = vcmask 392192
    %v78 = vsel %vm76, %v46, 0
    %v81 = vsel %vm76, %v47, 0
    %v84 = vsel %vm76, %v48, 0
    %v87 = vsel %vm76, %v49, 0
    %89 = vmatpush.msra.mxu0 0.0
    %90 = vmatpush.msra.mxu0 0.0
    %91 = vmatpush.msra.mxu0 0.0
    %92 = vmatpush.msra.mxu0 0.0
    %93 = vmatpush.msra.mxu0 0.0
    %94 = vmatpush.msra.mxu0 0.0
    %95 = vmatpush.msra.mxu0 0.0
    %96 = vmatpush.msra.mxu0 0.0
    %97 = vmatpush.msra.mxu0 0.0
    %98 = vmatpush.msra.mxu0 0.0
    %99 = vmatpush.msra.mxu0 %v55
    %100 = vmatpush.msra.mxu0 %v54
    %101 = vmatpush.msra.mxu0 %v53
    %102 = vmatpush.msra.mxu0 %v52
    %103 = vmatpush.msra.mxu0 %v51
    %104 = vmatpush.msra.mxu0 %v50
    %105 = vmatmul.f32.gmra.mxu0 %v78
    %v106 = vpop.f32.mrf.mxu0
    %v107 = vadd.f32 %v59, %v106
    %108 = vmatmul.f32.gmra.mxu0 %v81
    %v109 = vpop.f32.mrf.mxu0
    %v110 = vadd.f32 %v64, %v109
    %111 = vmatmul.f32.gmra.mxu0 %v84
    %v112 = vpop.f32.mrf.mxu0
    %v113 = vadd.f32 %v69, %v112
    %114 = vmatmul.f32.gmra.mxu0 %v87
    %v115 = vpop.f32.mrf.mxu0
    %v116 = vadd.f32 %v74, %v115
    %117 = vdwg.mxu0
    %v118 = vmax.f32 %v107, 0.0
    %v119 = vmax.f32 %v110, 0.0
    %v120 = vmax.f32 %v113, 0.0
    %v121 = vmax.f32 %v116, 0.0
    %v122 = vld [vmem:[%s2] sm:$0xff]
    %v123 = vld [vmem:[%s2 + $0x8] sm:$0xff]
    %v124 = vld [vmem:[%s2 + $0x10] sm:$0xff]
    %v125 = vld [vmem:[%s2 + $0x18] sm:$0xff]
    %126 = vset.pattern.permute.xlu0 1
    %127 = vperm.xlu0 %126, %v42
    %v128 = vpop.permute.xlu0 %127
    %130 = vset.pattern.permute.xlu0 1
    %131 = vperm.xlu0 %130, %v43
    %v132 = vpop.permute.xlu0 %131
    %134 = vset.pattern.permute.xlu0 1
    %135 = vperm.xlu0 %134, %v44
    %v136 = vpop.permute.xlu0 %135
    %138 = vset.pattern.permute.xlu0 1
    %139 = vperm.xlu0 %138, %v45
    %v140 = vpop.permute.xlu0 %139
    %vm142 = vcmask 261120
    %v144 = vsel %vm142, %v122, 0
    %v147 = vsel %vm142, %v123, 0
    %v150 = vsel %vm142, %v124, 0
    %v153 = vsel %vm142, %v125, 0
    %155 = vmatpush.msra.mxu0 0.0
    %156 = vmatpush.msra.mxu0 0.0
    %157 = vmatpush.msra.mxu0 0.0
    %158 = vmatpush.msra.mxu0 0.0
    %159 = vmatpush.msra.mxu0 0.0
    %160 = vmatpush.msra.mxu0 0.0
    %161 = vmatpush.msra.mxu0 0.0
    %162 = vmatpush.msra.mxu0 0.0
    %163 = vmatpush.msra.mxu0 0.0
    %164 = vmatpush.msra.mxu0 0.0
    %165 = vmatpush.msra.mxu0 0.0
    %166 = vmatpush.msra.mxu0 0.0
    %167 = vmatpush.msra.mxu0 %v121
    %168 = vmatpush.msra.mxu0 %v120
    %169 = vmatpush.msra.mxu0 %v119
    %170 = vmatpush.msra.mxu0 %v118
    %171 = vmatmul.f32.gmra.mxu0 %v144
    %v172 = vpop.f32.mrf.mxu0
    %v173 = vadd.f32 %v128, %v172
    %174 = vmatmul.f32.gmra.mxu0 %v147
    %v175 = vpop.f32.mrf.mxu0
    %v176 = vadd.f32 %v132, %v175
    %177 = vmatmul.f32.gmra.mxu0 %v150
    %v178 = vpop.f32.mrf.mxu0
    %v179 = vadd.f32 %v136, %v178
    %180 = vmatmul.f32.gmra.mxu0 %v153
    %v181 = vpop.f32.mrf.mxu0
    %v182 = vadd.f32 %v140, %v181
    %183 = vdwg.mxu0
    %v184 = vmax.f32 %v173, 0.0
    %v185 = vmax.f32 %v176, 0.0
    %v186 = vmax.f32 %v179, 0.0
    %v187 = vmax.f32 %v182, 0.0
    %s188 = scalar_lea.vmem %s2, 32
    %v189 = vld [vmem:[%s188] sm:$0xff]
    %v190 = vld [vmem:[%s188 + $0x8] sm:$0xff]
    %v191 = vld [vmem:[%s188 + $0x10] sm:$0xff]
    %v192 = vld [vmem:[%s188 + $0x18] sm:$0xff]
    %193 = vset.pattern.permute.xlu0 2
    %194 = vperm.xlu0 %193, %v42
    %v195 = vpop.permute.xlu0 %194
    %197 = vset.pattern.permute.xlu0 2
    %198 = vperm.xlu0 %197, %v43
    %v199 = vpop.permute.xlu0 %198
    %201 = vset.pattern.permute.xlu0 2
    %202 = vperm.xlu0 %201, %v44
    %v203 = vpop.permute.xlu0 %202
    %205 = vset.pattern.permute.xlu0 2
    %206 = vperm.xlu0 %205, %v45
    %v207 = vpop.permute.xlu0 %206
    %v210 = vsel %vm142, %v189, 0
    %v213 = vsel %vm142, %v190, 0
    %v216 = vsel %vm142, %v191, 0
    %v219 = vsel %vm142, %v192, 0
    %221 = vmatpush.msra.mxu0 0.0
    %222 = vmatpush.msra.mxu0 0.0
    %223 = vmatpush.msra.mxu0 0.0
    %224 = vmatpush.msra.mxu0 0.0
    %225 = vmatpush.msra.mxu0 0.0
    %226 = vmatpush.msra.mxu0 0.0
    %227 = vmatpush.msra.mxu0 0.0
    %228 = vmatpush.msra.mxu0 0.0
    %229 = vmatpush.msra.mxu0 0.0
    %230 = vmatpush.msra.mxu0 0.0
    %231 = vmatpush.msra.mxu0 0.0
    %232 = vmatpush.msra.mxu0 0.0
    %233 = vmatpush.msra.mxu0 %v187
    %234 = vmatpush.msra.mxu0 %v186
    %235 = vmatpush.msra.mxu0 %v185
    %236 = vmatpush.msra.mxu0 %v184
    %237 = vmatmul.f32.gmra.mxu0 %v210
    %v238 = vpop.f32.mrf.mxu0
    %v239 = vadd.f32 %v195, %v238
    %240 = vmatmul.f32.gmra.mxu0 %v213
    %v241 = vpop.f32.mrf.mxu0
    %v242 = vadd.f32 %v199, %v241
    %243 = vmatmul.f32.gmra.mxu0 %v216
    %v244 = vpop.f32.mrf.mxu0
    %v245 = vadd.f32 %v203, %v244
    %246 = vmatmul.f32.gmra.mxu0 %v219
    %v247 = vpop.f32.mrf.mxu0
    %v248 = vadd.f32 %v207, %v247
    %249 = vdwg.mxu0
    %v250 = vmax.f32 %v239, 0.0
    %v251 = vmax.f32 %v242, 0.0
    %v252 = vmax.f32 %v245, 0.0
    %v253 = vmax.f32 %v248, 0.0
    %v254 = vld [vmem:[%s4] sm:$0x1]
    %v255 = vld [vmem:[#allocation2] sm:$0x1]
    %257 = vset.pattern.permute.xlu0 0
    %258 = vperm.xlu0 %257, %v255
    %v259 = vpop.permute.xlu0 %258
    %v261 = vperm.slane %v259, 0
    %v263 = vsel %vm142, %v254, 0
    %265 = vmatpush.msra.mxu0 0.0
    %266 = vmatpush.msra.mxu0 0.0
    %267 = vmatpush.msra.mxu0 0.0
    %268 = vmatpush.msra.mxu0 0.0
    %269 = vmatpush.msra.mxu0 0.0
    %270 = vmatpush.msra.mxu0 0.0
    %271 = vmatpush.msra.mxu0 0.0
    %272 = vmatpush.msra.mxu0 0.0
    %273 = vmatpush.msra.mxu0 0.0
    %274 = vmatpush.msra.mxu0 0.0
    %275 = vmatpush.msra.mxu0 0.0
    %276 = vmatpush.msra.mxu0 0.0
    %277 = vmatpush.msra.mxu0 %v253
    %278 = vmatpush.msra.mxu0 %v252
    %279 = vmatpush.msra.mxu0 %v251
    %280 = vmatpush.msra.mxu0 %v250
    %281 = vmatmul.f32.gmra.mxu0 %v263
    %v282 = vpop.f32.mrf.mxu0
    %v283 = vadd.f32 %v261, %v282
    %284 = vdwg.mxu0
    %vm285 = vcmask 24576
    %286 = vst.msk [vmem:[#allocation6] sm:$0x1] %vm285, %v283
    // Predicated region
    $region30: #{tpu_custom_call.1} parent=1 // pred_check
      _
    $region31: #{tpu_custom_call.1} parent=1 // pred_check_branch
      %288 = sbr.rel (0) target = $region33
    $region32: #{tpu_custom_call.1} parent=1 // pred_region
      %290 = vsyncadd [#allocation5], 0
      %s292 = sshll.u32 [#allocation6], 4
      %s293 = int_to_ptr.vmem [resolvable:$true] %s292
      %s294 = sshll.u32 %s6, 4
      %s295 = int_to_ptr.hbm [resolvable:$true] %s294
      %297 = dma.vmem_to_hbm [thread:$0]  %s293, 16, %s295, [#allocation5]
    $region33: #{tpu_custom_call.1} parent=1 // pred_fallthru
      _
    // Predicated region
    $region34: #{tpu_custom_call.1} parent=1 // pred_check
      _
    $region35: #{tpu_custom_call.1} parent=1 // pred_check_branch
      %299 = sbr.rel (0) target = $region37
    $region36: #{tpu_custom_call.1} parent=1 // pred_region
      %301 = dma.done [#allocation5], 16
    $region37: #{tpu_custom_call.1} parent=1 // pred_fallthru
      _
    %302 = vsyncpa [#allocation4], 1
    %303 = vsyncpa [#allocation5], 1

</llo_original>
